<compile_context>
chip_gen: v5e
topology: v5e:2x2
jax: 0.10.0
libtpu: 0.0.40
codegen_flags: <defaults>
</compile_context>

<pallas_src>
import jax
import jax.numpy as jnp
from jax.experimental import pallas as pl
from jax.experimental.pallas import tpu as pltpu

_EPS = 1e-5
_TILE_BYTES_TARGET = 4 * 1024 * 1024   # ~4 MiB per (C, TM) input tile
_VMEM_LIMIT = 32 * 1024 * 1024         # safe on v7x (64 MiB phys), generous on v5e/v6e


def _pick_tile_m(M, C, itemsize):
    """Largest multiple of 128 dividing M with C*TM*itemsize <= ~4 MiB, else full M."""
    if M % 128 != 0:
        return M  # fall back to a full-extent block (allowed by the (8,128) rule)
    target_elems = max(128, _TILE_BYTES_TARGET // max(1, C * itemsize))
    target = (target_elems // 128) * 128
    if M <= target:
        return M
    t = min(target, (M // 128) * 128)
    while t >= 128:
        if M % t == 0:
            return t
        t -= 128
    return M


def _bn_stats_kernel(x_ref, sum_ref, sq_ref):
    # x_ref: (1, C, TM) tile of (N, C, M).
    # sum_ref / sq_ref: (1, C, 1) accumulators, resident across the m grid axis.
    @pl.when(pl.program_id(1) == 0)
    def _():
        sum_ref[...] = jnp.zeros_like(sum_ref)
        sq_ref[...] = jnp.zeros_like(sq_ref)

    x = x_ref[...].astype(jnp.float32)
    # Per-tile lane reductions (XLU), hidden under the next tile's DMA.
    sum_ref[...] += jnp.sum(x, axis=-1, keepdims=True)
    sq_ref[...] += jnp.sum(x * x, axis=-1, keepdims=True)


def _bn_apply_kernel(x_ref, scale_ref, shift_ref, o_ref):
    # x_ref/o_ref: (1, C, TM); scale/shift: (1, C, 1), constant block index.
    x = x_ref[...].astype(jnp.float32)
    o_ref[...] = (x * scale_ref[...] + shift_ref[...]).astype(o_ref.dtype)


def batchnorm3d(x, weight, bias, eps=_EPS):
    """x: (N, C, D, H, W). weight/bias: (C,). Training-mode BN forward."""
    N, C, D, H, W = x.shape
    M = D * H * W
    TM = _pick_tile_m(M, C, x.dtype.itemsize)
    MT = M // TM

    x3 = x.reshape(N, C, M)  # contiguous reshape: free, no HBM traffic

    # ---- pass 1: per-(n, c) sum and sum-of-squares -------------------------
    sums, sqs = pl.pallas_call(
        _bn_stats_kernel,
        out_shape=(jax.ShapeDtypeStruct((N, C, 1), jnp.float32),
                   jax.ShapeDtypeStruct((N, C, 1), jnp.float32)),
        grid_spec=pltpu.PrefetchScalarGridSpec(
            num_scalar_prefetch=0,
            grid=(N, MT),
            in_specs=[pl.BlockSpec((1, C, TM), lambda n, m: (n, 0, m))],
            out_specs=(pl.BlockSpec((1, C, 1), lambda n, m: (n, 0, 0)),
                       pl.BlockSpec((1, C, 1), lambda n, m: (n, 0, 0))),
        ),
        compiler_params=pltpu.CompilerParams(
            dimension_semantics=("parallel", "arbitrary"),
            vmem_limit_bytes=_VMEM_LIMIT),
    )(x3)

    # ---- tiny per-channel finalize (C-length math, plain JAX) --------------
    count = jnp.float32(N * M)
    total = jnp.sum(sums[:, :, 0], axis=0)         # (C,)
    total_sq = jnp.sum(sqs[:, :, 0], axis=0)       # (C,)
    mean = total / count
    var = jnp.maximum(total_sq / count - mean * mean, 0.0)  # biased variance
    inv_std = jax.lax.rsqrt(var + jnp.float32(eps))
    scale = weight.astype(jnp.float32) * inv_std             # (C,)
    shift = bias.astype(jnp.float32) - mean * scale          # (C,)
    scale3 = scale.reshape(1, C, 1)
    shift3 = shift.reshape(1, C, 1)

    # ---- pass 2: y = x * scale[c] + shift[c] --------------------------------
    out3 = pl.pallas_call(
        _bn_apply_kernel,
        out_shape=jax.ShapeDtypeStruct((N, C, M), x.dtype),
        grid_spec=pltpu.PrefetchScalarGridSpec(
            num_scalar_prefetch=0,
            grid=(N, MT),
            in_specs=[pl.BlockSpec((1, C, TM), lambda n, m: (n, 0, m)),
                      pl.BlockSpec((1, C, 1), lambda n, m: (0, 0, 0)),
                      pl.BlockSpec((1, C, 1), lambda n, m: (0, 0, 0))],
            out_specs=pl.BlockSpec((1, C, TM), lambda n, m: (n, 0, m)),
        ),
        compiler_params=pltpu.CompilerParams(
            dimension_semantics=("parallel", "parallel"),
            vmem_limit_bytes=_VMEM_LIMIT),
    )(x3, scale3, shift3)

    return out3.reshape(N, C, D, H, W)  # contiguous reshape: free


if __name__ == "__main__":
    key = jax.random.PRNGKey(0)
    N, C, D, H, W = 2, 4, 16, 16, 16
    x = jax.random.normal(key, (N, C, D, H, W), dtype=jnp.float32)

    # Deterministic parameter init matching nn.BatchNorm3d defaults.
    weight = jnp.ones((C,), dtype=jnp.float32)
    bias = jnp.zeros((C,), dtype=jnp.float32)

    out = batchnorm3d(x, weight, bias)
    jax.block_until_ready(out)

    # Sanity-check against a plain-JAX reference of training-mode BN.
    mean = jnp.mean(x, axis=(0, 2, 3, 4), keepdims=True)
    var = jnp.mean((x - mean) ** 2, axis=(0, 2, 3, 4), keepdims=True)
    ref = (x - mean) / jnp.sqrt(var + _EPS) * weight.reshape(1, C, 1, 1, 1) \
          + bias.reshape(1, C, 1, 1, 1)
    assert jnp.allclose(out, ref, atol=1e-4, rtol=1e-4), "mismatch vs reference"

    print("KERNEL_OK")
</pallas_src>

<mosaic_0001>
module attributes {stable_mosaic.version = 11 : i64} {
  func.func @_bn_stats_kernel(%arg0: i32, %arg1: i32, %arg2: memref<1x4x4096xf32, #tpu.memory_space<vmem>>, %arg3: memref<1x4x1xf32, #tpu.memory_space<vmem>>, %arg4: memref<1x4x1xf32, #tpu.memory_space<vmem>>) attributes {dimension_semantics = [#tpu.dimension_semantics<parallel>, #tpu.dimension_semantics<arbitrary>], iteration_bounds = array<i64: 2, 1>, scalar_prefetch = 0 : i64, scratch_operands = 0 : i64, tpu.core_type = #tpu.core_type<tc>, window_params = [{transform_indices = @transform_0, window_bounds = array<i64: 1, 4, 4096>}, {transform_indices = @transform_1, window_bounds = array<i64: 1, 4, 1>}, {transform_indices = @transform_2, window_bounds = array<i64: 1, 4, 1>}]} {
    %c0_i32 = arith.constant 0 : i32
    %0 = arith.cmpi eq, %arg1, %c0_i32 : i32
    %1 = arith.extui %0 : i1 to i32
    %c0_i32_0 = arith.constant 0 : i32
    %2 = arith.cmpi ne, %1, %c0_i32_0 : i32
    scf.if %2 {
      %cst_16 = arith.constant 0.000000e+00 : f32
      %15 = vector.broadcast %cst_16 : f32 to vector<1x4x1xf32>
      %c0_17 = arith.constant 0 : index
      %c0_18 = arith.constant 0 : index
      %c0_19 = arith.constant 0 : index
      %16 = vector.load %arg3[%c0_17, %c0_18, %c0_19] : memref<1x4x1xf32, #tpu.memory_space<vmem>>, vector<1x4x1xf32>
      tpu.vector_store %arg3[%c0_17, %c0_18, %c0_19], %15 {strides = array<i32>} : memref<1x4x1xf32, #tpu.memory_space<vmem>>, vector<1x4x1xf32>,
      %cst_20 = arith.constant 0.000000e+00 : f32
      %17 = vector.broadcast %cst_20 : f32 to vector<1x4x1xf32>
      %c0_21 = arith.constant 0 : index
      %c0_22 = arith.constant 0 : index
      %c0_23 = arith.constant 0 : index
      %18 = vector.load %arg4[%c0_21, %c0_22, %c0_23] : memref<1x4x1xf32, #tpu.memory_space<vmem>>, vector<1x4x1xf32>
      tpu.vector_store %arg4[%c0_21, %c0_22, %c0_23], %17 {strides = array<i32>} : memref<1x4x1xf32, #tpu.memory_space<vmem>>, vector<1x4x1xf32>,
    } else {
    }
    %c0 = arith.constant 0 : index
    %c0_1 = arith.constant 0 : index
    %c0_2 = arith.constant 0 : index
    %3 = vector.load %arg2[%c0, %c0_1, %c0_2] : memref<1x4x4096xf32, #tpu.memory_space<vmem>>, vector<1x4x4096xf32>
    %c0_3 = arith.constant 0 : index
    %c0_4 = arith.constant 0 : index
    %c0_5 = arith.constant 0 : index
    %4 = vector.load %arg3[%c0_3, %c0_4, %c0_5] : memref<1x4x1xf32, #tpu.memory_space<vmem>>, vector<1x4x1xf32>
    %cst = arith.constant dense<0.000000e+00> : vector<1x4xf32>
    %5 = vector.multi_reduction <add>, %3, %cst [2] : vector<1x4x4096xf32> to vector<1x4xf32>
    %6 = vector.shape_cast %5 : vector<1x4xf32> to vector<1x4x1xf32>
    %7 = arith.addf %4, %6 : vector<1x4x1xf32>
    %c0_6 = arith.constant 0 : index
    %c0_7 = arith.constant 0 : index
    %c0_8 = arith.constant 0 : index
    %8 = vector.load %arg3[%c0_6, %c0_7, %c0_8] : memref<1x4x1xf32, #tpu.memory_space<vmem>>, vector<1x4x1xf32>
    tpu.vector_store %arg3[%c0_6, %c0_7, %c0_8], %7 {strides = array<i32>} : memref<1x4x1xf32, #tpu.memory_space<vmem>>, vector<1x4x1xf32>,
    %c0_9 = arith.constant 0 : index
    %c0_10 = arith.constant 0 : index
    %c0_11 = arith.constant 0 : index
    %9 = vector.load %arg4[%c0_9, %c0_10, %c0_11] : memref<1x4x1xf32, #tpu.memory_space<vmem>>, vector<1x4x1xf32>
    %10 = arith.mulf %3, %3 : vector<1x4x4096xf32>
    %cst_12 = arith.constant dense<0.000000e+00> : vector<1x4xf32>
    %11 = vector.multi_reduction <add>, %10, %cst_12 [2] : vector<1x4x4096xf32> to vector<1x4xf32>
    %12 = vector.shape_cast %11 : vector<1x4xf32> to vector<1x4x1xf32>
    %13 = arith.addf %9, %12 : vector<1x4x1xf32>
    %c0_13 = arith.constant 0 : index
    %c0_14 = arith.constant 0 : index
    %c0_15 = arith.constant 0 : index
    %14 = vector.load %arg4[%c0_13, %c0_14, %c0_15] : memref<1x4x1xf32, #tpu.memory_space<vmem>>, vector<1x4x1xf32>
    tpu.vector_store %arg4[%c0_13, %c0_14, %c0_15], %13 {strides = array<i32>} : memref<1x4x1xf32, #tpu.memory_space<vmem>>, vector<1x4x1xf32>,
    return
  }
  func.func @transform_0(%arg0: i32, %arg1: i32) -> (i32, i32, i32) {
    %c0_i32 = arith.constant 0 : i32
    %c0_i32_0 = arith.constant 0 : i32
    return %arg0, %c0_i32, %arg1 : i32, i32, i32
  }
  func.func @transform_1(%arg0: i32, %arg1: i32) -> (i32, i32, i32) {
    %c0_i32 = arith.constant 0 : i32
    %c0_i32_0 = arith.constant 0 : i32
    %c0_i32_1 = arith.constant 0 : i32
    return %arg0, %c0_i32, %c0_i32_0 : i32, i32, i32
  }
  func.func @transform_2(%arg0: i32, %arg1: i32) -> (i32, i32, i32) {
    %c0_i32 = arith.constant 0 : i32
    %c0_i32_0 = arith.constant 0 : i32
    %c0_i32_1 = arith.constant 0 : i32
    return %arg0, %c0_i32, %c0_i32_0 : i32, i32, i32
  }
}

</mosaic_0001>

<llo_original>
// kernel: tpu_custom_call.1
$region0: #{tpu_custom_call.1}
  #allocation0 [shape = 'u32[]', space=smem, size = 0x4, offset = 0x4, fixed_abs, tag = 'smem constant byte address 0x4 - core index']
  #allocation1 [shape = 'u32[72,128]{1,0:T(1,128)}', space=vmem, size = 0x9000, scoped, tag = 'internal scratch']
  %s0 = inlined_call_operand.hbm [shape: f32[2,4,4096], index: 0, kind: input, shape index: {}]
  %s1 = inlined_call_operand.vmem [shape: f32[2,4,1], index: 1, kind: output, shape index: {0}]
  %s2 = inlined_call_operand.vmem [shape: f32[2,4,1], index: 2, kind: output, shape index: {1}]
  %3 = xla_tuple %s1, %s2
  %s4 = sld [smem:[#allocation0]]
  $region53: #{tpu_custom_call.1} parent=0
    _
  %s6 = ssub.s32 1, %s4
  %s7 = scalar_select 0, %s6, %s4
  $region1: #{tpu_custom_call.1} parent=0
    #allocation2 [shape = 'u8[131072]{0}', space=vmem, size = 0x20000, scoped, tag = 'input window, operand 0']
    #allocation3 [shape = 's32[2]{0}', space=sflag, size = 0x8, scoped, tag = 'scoped memory for tpu_custom_call.1']
    %8 = vsyncpa [#allocation3], 0
    %s9 = scalar_lea.sflag [#allocation3], 1
    %10 = vsyncpa %s9, 0
    loop: start=0, step=1, limit=4
    $region2: #{tpu_custom_call.1} parent=1 // loop_pre_header
      _
    $region3: #{tpu_custom_call.1} parent=1 // loop_header
      %s12 = sphi 0, %s16
      %p13 = scmp.ge.s32.totalorder %s12, 4
      %s19 = sphi 0, %s31
      %s20 = sphi 0, %s27
      %s21 = sphi 0, %s19
      %s22 = sphi 0, %s20
      %s23 = sphi 0, %s21
      %s24 = sphi 0, %s22
      %s36 = sphi 0, %s38
      %s39 = sphi 0, %s36
      %s40 = sphi 0, %s39
      %s56 = sphi 0, %s40
      %s62 = sphi 0, %s64
      %s65 = sphi 0, %s62
      %s66 = sphi 0, %s65
      %s82 = sphi 0, %s66
      %s88 = sphi 0, %s90
      %s91 = sphi 0, %s88
      %s92 = sphi 0, %s91
      %s108 = sphi 0, %s92
    $region4: #{tpu_custom_call.1} parent=1 // loop_header_branch
      %15 = sbr.rel (%p13) target = $region8
    $region5: #{tpu_custom_call.1} parent=1 // loop_body
      %s17 = ssub.s32 %s12, 1
      %s18 = ssub.s32 %s12, 2
      %s25 = sadd.s32 1, %s20
      %p26 = scmp.ge.s32.totalorder %s25, 1
      %s27 = scalar_select %p26, 0, %s25
      %s28 = sadd.s32 1, %s19
      %s29 = scalar_select %p26, %s28, %s19
      %p30 = scmp.ge.s32.totalorder %s29, 2
      %s31 = scalar_select %p30, 0, %s29
      %s32 = ssub.s32 %s19, %s31
      %s33 = ssub.s32 %s20, %s27
      %s34 = sor.u32 %s32, %s33
      %p35 = scmp.eq.s32.totalorder %s34, 0
      %s37 = sadd.s32 %s36, 1
      %s38 = scalar_select %p35, %s36, %s37
      %p41 = pneg %p35
      %p42 = scmp.eq.s32.totalorder %s12, 1
      %p43 = por %p41, %p42
      %p44 = scmp.ne.s32.totalorder %s36, %s39
      %p45 = scmp.eq.s32.totalorder %s12, 0
      %p46 = por %p44, %p45
      %p47 = scmp.ne.s32.totalorder %s36, %s39
      %p48 = scmp.eq.s32.totalorder %s17, 1
      %p49 = por %p47, %p48
      %p50 = scmp.ne.s32.totalorder %s39, %s40
      %p51 = scmp.eq.s32.totalorder %s17, 0
      %p52 = por %p50, %p51
      %p53 = scmp.ne.s32.totalorder %s39, %s40
      %p54 = scmp.eq.s32.totalorder %s18, 1
      %p55 = por %p53, %p54
      %p57 = scmp.ne.s32.totalorder %s40, %s56
      %p58 = scmp.eq.s32.totalorder %s18, 0
      %p59 = por %p57, %p58
      %s60 = ssub.s32 %s19, %s31
      %p61 = scmp.eq.s32.totalorder %s60, 0
      %s63 = sadd.s32 %s62, 1
      %s64 = scalar_select %p61, %s62, %s63
      %p67 = pneg %p61
      %p68 = scmp.eq.s32.totalorder %s12, 1
      %p69 = por %p67, %p68
      %p70 = scmp.ne.s32.totalorder %s62, %s65
      %p71 = scmp.eq.s32.totalorder %s12, 0
      %p72 = por %p70, %p71
      %p73 = scmp.ne.s32.totalorder %s62, %s65
      %p74 = scmp.eq.s32.totalorder %s17, 1
      %p75 = por %p73, %p74
      %p76 = scmp.ne.s32.totalorder %s65, %s66
      %p77 = scmp.eq.s32.totalorder %s17, 0
      %p78 = por %p76, %p77
      %p79 = scmp.ne.s32.totalorder %s65, %s66
      %p80 = scmp.eq.s32.totalorder %s18, 1
      %p81 = por %p79, %p80
      %p83 = scmp.ne.s32.totalorder %s66, %s82
      %p84 = scmp.eq.s32.totalorder %s18, 0
      %p85 = por %p83, %p84
      %s86 = ssub.s32 %s19, %s31
      %p87 = scmp.eq.s32.totalorder %s86, 0
      %s89 = sadd.s32 %s88, 1
      %s90 = scalar_select %p87, %s88, %s89
      %p93 = pneg %p87
      %p94 = scmp.eq.s32.totalorder %s12, 1
      %p95 = por %p93, %p94
      %p96 = scmp.ne.s32.totalorder %s88, %s91
      %p97 = scmp.eq.s32.totalorder %s12, 0
      %p98 = por %p96, %p97
      %p99 = scmp.ne.s32.totalorder %s88, %s91
      %p100 = scmp.eq.s32.totalorder %s17, 1
      %p101 = por %p99, %p100
      %p102 = scmp.ne.s32.totalorder %s91, %s92
      %p103 = scmp.eq.s32.totalorder %s17, 0
      %p104 = por %p102, %p103
      %p105 = scmp.ne.s32.totalorder %s91, %s92
      %p106 = scmp.eq.s32.totalorder %s18, 1
      %p107 = por %p105, %p106
      %p109 = scmp.ne.s32.totalorder %s92, %s108
      %p110 = scmp.eq.s32.totalorder %s18, 0
      %p111 = por %p109, %p110
      %p112 = scmp.le.s32.totalorder 1, %s12
      %p113 = scmp.lt.s32.totalorder %s12, 3
      %p114 = pnand %p112, %p113
      %p115 = pneg %p114
      // Predicated region
      $region9: #{tpu_custom_call.1} parent=5 // pred_check
        _
      $region10: #{tpu_custom_call.1} parent=5 // pred_check_branch
        %117 = sbr.rel (%p114) target = $region12
      $region11: #{tpu_custom_call.1} parent=5 // pred_region
        %s118 = ssub.s32 %s12, 1
      $region12: #{tpu_custom_call.1} parent=5 // pred_fallthru
        _
      %p119 = scmp.lt.s32.totalorder %s12, 2
      // Predicated region
      $region13: #{tpu_custom_call.1} parent=5 // pred_check
        %p120 = pneg %p119
      $region14: #{tpu_custom_call.1} parent=5 // pred_check_branch
        %122 = sbr.rel (%p120) target = $region16
      $region15: #{tpu_custom_call.1} parent=5 // pred_region
        // Predicated region
        $region17: #{tpu_custom_call.1} parent=15 // pred_check
          %p123 = pneg %p46
        $region18: #{tpu_custom_call.1} parent=15 // pred_check_branch
          %125 = sbr.rel (%p123) target = $region20
        $region19: #{tpu_custom_call.1} parent=15 // pred_region
          %s126 = sand.u32 %s36, 1
          %s127 = scalar_lea.sflag [#allocation3], %s126
          %s128 = sand.u32 %s36, 1
          %s129 = smul.addr %s128, 128
          %s130 = scalar_lea.vmem [#allocation2], %s129
          %s131 = smul.u32 32, %s20
          %133 = vsyncadd %s127, 0
          %s134 = smul.addr %s19, 32
          %s135 = sadd.s32 %s131, %s134
          %s136 = smul.addr %s135, 4
          %s137 = scalar_lea.hbm %s0, %s136
          %s139 = sshll.u32 %s137, 4
          %s140 = int_to_ptr.hbm [resolvable:$true] %s139
          %s141 = sshll.u32 %s130, 4
          %s142 = int_to_ptr.vmem [resolvable:$true] %s141
          %144 = dma.hbm_to_vmem [thread:$0]  %s140, 2048, %s142, %s127
        $region20: #{tpu_custom_call.1} parent=15 // pred_fallthru
          _
      $region16: #{tpu_custom_call.1} parent=5 // pred_fallthru
        _
      %p145 = scmp.le.s32.totalorder 1, %s12
      %p146 = scmp.lt.s32.totalorder %s12, 3
      %p147 = pnand %p145, %p146
      %p148 = pneg %p147
      // Predicated region
      $region21: #{tpu_custom_call.1} parent=5 // pred_check
        _
      $region22: #{tpu_custom_call.1} parent=5 // pred_check_branch
        %150 = sbr.rel (%p147) target = $region24
      $region23: #{tpu_custom_call.1} parent=5 // pred_region
        %s151 = ssub.s32 %s12, 1
        %s152 = sand.u32 %s39, 1
        %s153 = scalar_lea.sflag [#allocation3], %s152
        %s154 = sand.u32 %s39, 1
        %s155 = smul.addr %s154, 128
        %s156 = scalar_lea.vmem [#allocation2], %s155
        // Predicated region
        $region25: #{tpu_custom_call.1} parent=23 // pred_check
          %p157 = pneg %p52
        $region26: #{tpu_custom_call.1} parent=23 // pred_check_branch
          %159 = sbr.rel (%p157) target = $region28
        $region27: #{tpu_custom_call.1} parent=23 // pred_region
          %161 = dma.done %s153, 2048
        $region28: #{tpu_custom_call.1} parent=23 // pred_fallthru
          _
        %s162 = sand.u32 %s39, 1
        %s163 = scalar_lea.sflag [#allocation3], %s162
        %s164 = sand.u32 %s39, 1
        %s165 = smul.addr %s164, 128
        %s166 = scalar_lea.vmem [#allocation2], %s165
        %p167 = pneg %p52
        %p168 = pneg %p49
        %p169 = pneg %p78
        %p170 = pneg %p75
        %p171 = scmp.lt.s32.totalorder %s21, 1
        %s172 = scalar_select %p171, %s21, 1
        %s173 = smul.addr %s172, 4
        %s174 = scalar_lea.vmem %s1, %s173
        %p175 = pneg %p104
        %p176 = pneg %p101
        %p177 = scmp.lt.s32.totalorder %s21, 1
        %s178 = scalar_select %p177, %s21, 1
        %s179 = smul.addr %s178, 4
        %s180 = scalar_lea.vmem %s2, %s179
        %s181 = smul.u32 32, %s22
        %p182 = scmp.lt.s32.totalorder %s21, 1
        %s183 = scalar_select %p182, %s21, 1
        %s184 = smul.addr %s183, 4
        %s185 = scalar_lea.vmem %s1, %s184
        %p186 = scmp.lt.s32.totalorder %s21, 1
        %s187 = scalar_select %p186, %s21, 1
        %s188 = smul.addr %s187, 4
        %s189 = scalar_lea.vmem %s2, %s188
        %p190 = scmp.eq.s32.totalorder %s22, 0
        // Predicated region
        $region29: #{tpu_custom_call.1} parent=23 // pred_check
          %p191 = pneg %p190
        $region30: #{tpu_custom_call.1} parent=23 // pred_check_branch
          %193 = sbr.rel (%p191) target = $region32
        $region31: #{tpu_custom_call.1} parent=23 // pred_region
          %vm194 = vcmask 3072
          %195 = vst.msk [vmem:[%s185] sm:$0xf] %vm194, 0.0
          %196 = vst.msk [vmem:[%s189] sm:$0xf] %vm194, 0.0
        $region32: #{tpu_custom_call.1} parent=23 // pred_fallthru
          _
        %v197 = vld [vmem:[%s156] sm:$0xff]
        %v198 = vld [vmem:[%s156 + $0x8] sm:$0xff]
        %v199 = vld [vmem:[%s156 + $0x10] sm:$0xff]
        %v200 = vld [vmem:[%s156 + $0x18] sm:$0xff]
        %v201 = vld [vmem:[%s156 + $0x20] sm:$0xff]
        %v202 = vld [vmem:[%s156 + $0x28] sm:$0xff]
        %v203 = vld [vmem:[%s156 + $0x30] sm:$0xff]
        %v204 = vld [vmem:[%s156 + $0x38] sm:$0xff]
        %v205 = vld [vmem:[%s156 + $0x40] sm:$0xff]
        %v206 = vld [vmem:[%s156 + $0x48] sm:$0xff]
        %v207 = vld [vmem:[%s156 + $0x50] sm:$0xff]
        %v208 = vld [vmem:[%s156 + $0x58] sm:$0xff]
        %v209 = vld [vmem:[%s156 + $0x60] sm:$0xff]
        %v210 = vld [vmem:[%s156 + $0x68] sm:$0xff]
        %v211 = vld [vmem:[%s156 + $0x70] sm:$0xff]
        %v212 = vld [vmem:[%s156 + $0x78] sm:$0xff]
        %v213 = vld [vmem:[%s185] sm:$0xf]
        %230 = vst [vmem:[#allocation1] ss:$2 sm:$0xff] %v197
        %s231 = scalar_lea.vmem [#allocation1], 16
        %232 = vst [vmem:[%s231] ss:$2 sm:$0xff] %v198
        %s233 = scalar_lea.vmem [#allocation1], 32
        %234 = vst [vmem:[%s233] ss:$2 sm:$0xff] %v199
        %s235 = scalar_lea.vmem [#allocation1], 48
        %236 = vst [vmem:[%s235] ss:$2 sm:$0xff] %v200
        %v237 = vld.sshfl [vmem:[#allocation1] sm:$0xff pattern:$0x75316420]
        %v238 = vld.sshfl [vmem:[#allocation1 + $0x8] sm:$0xff pattern:$0x75316420]
        %v239 = vld.sshfl [vmem:[#allocation1 + $0x10] sm:$0xff pattern:$0x75316420]
        %v240 = vld.sshfl [vmem:[#allocation1 + $0x18] sm:$0xff pattern:$0x75316420]
        %v241 = vld.sshfl [vmem:[#allocation1 + $0x20] sm:$0xff pattern:$0x75316420]
        %v242 = vld.sshfl [vmem:[#allocation1 + $0x28] sm:$0xff pattern:$0x75316420]
        %v243 = vld.sshfl [vmem:[#allocation1 + $0x30] sm:$0xff pattern:$0x75316420]
        %v244 = vld.sshfl [vmem:[#allocation1 + $0x38] sm:$0xff pattern:$0x75316420]
        %245 = vst [vmem:[#allocation1] ss:$2 sm:$0xff] %v201
        %246 = vst [vmem:[%s231] ss:$2 sm:$0xff] %v202
        %247 = vst [vmem:[%s233] ss:$2 sm:$0xff] %v203
        %248 = vst [vmem:[%s235] ss:$2 sm:$0xff] %v204
        %v249 = vld.sshfl [vmem:[#allocation1] sm:$0xff pattern:$0x75316420]
        %v250 = vld.sshfl [vmem:[#allocation1 + $0x8] sm:$0xff pattern:$0x75316420]
        %v251 = vld.sshfl [vmem:[#allocation1 + $0x10] sm:$0xff pattern:$0x75316420]
        %v252 = vld.sshfl [vmem:[#allocation1 + $0x18] sm:$0xff pattern:$0x75316420]
        %v253 = vld.sshfl [vmem:[#allocation1 + $0x20] sm:$0xff pattern:$0x75316420]
        %v254 = vld.sshfl [vmem:[#allocation1 + $0x28] sm:$0xff pattern:$0x75316420]
        %v255 = vld.sshfl [vmem:[#allocation1 + $0x30] sm:$0xff pattern:$0x75316420]
        %v256 = vld.sshfl [vmem:[#allocation1 + $0x38] sm:$0xff pattern:$0x75316420]
        %257 = vst [vmem:[#allocation1] ss:$2 sm:$0xff] %v205
        %258 = vst [vmem:[%s231] ss:$2 sm:$0xff] %v206
        %259 = vst [vmem:[%s233] ss:$2 sm:$0xff] %v207
        %260 = vst [vmem:[%s235] ss:$2 sm:$0xff] %v208
        %v261 = vld.sshfl [vmem:[#allocation1] sm:$0xff pattern:$0x75316420]
        %v262 = vld.sshfl [vmem:[#allocation1 + $0x8] sm:$0xff pattern:$0x75316420]
        %v263 = vld.sshfl [vmem:[#allocation1 + $0x10] sm:$0xff pattern:$0x75316420]
        %v264 = vld.sshfl [vmem:[#allocation1 + $0x18] sm:$0xff pattern:$0x75316420]
        %v265 = vld.sshfl [vmem:[#allocation1 + $0x20] sm:$0xff pattern:$0x75316420]
        %v266 = vld.sshfl [vmem:[#allocation1 + $0x28] sm:$0xff pattern:$0x75316420]
        %v267 = vld.sshfl [vmem:[#allocation1 + $0x30] sm:$0xff pattern:$0x75316420]
        %v268 = vld.sshfl [vmem:[#allocation1 + $0x38] sm:$0xff pattern:$0x75316420]
        %269 = vst [vmem:[#allocation1] ss:$2 sm:$0xff] %v209
        %270 = vst [vmem:[%s231] ss:$2 sm:$0xff] %v210
        %271 = vst [vmem:[%s233] ss:$2 sm:$0xff] %v211
        %272 = vst [vmem:[%s235] ss:$2 sm:$0xff] %v212
        %v273 = vld.sshfl [vmem:[#allocation1] sm:$0xff pattern:$0x75316420]
        %v274 = vld.sshfl [vmem:[#allocation1 + $0x8] sm:$0xff pattern:$0x75316420]
        %v275 = vld.sshfl [vmem:[#allocation1 + $0x10] sm:$0xff pattern:$0x75316420]
        %v276 = vld.sshfl [vmem:[#allocation1 + $0x18] sm:$0xff pattern:$0x75316420]
        %v277 = vld.sshfl [vmem:[#allocation1 + $0x20] sm:$0xff pattern:$0x75316420]
        %v278 = vld.sshfl [vmem:[#allocation1 + $0x28] sm:$0xff pattern:$0x75316420]
        %v279 = vld.sshfl [vmem:[#allocation1 + $0x30] sm:$0xff pattern:$0x75316420]
        %v280 = vld.sshfl [vmem:[#allocation1 + $0x38] sm:$0xff pattern:$0x75316420]
        %vm313 = vcmask 1043456
        %v314 = vsel %vm313, %v237, 0.0
        %v315 = vsel %vm313, %v238, 0.0
        %v316 = vadd.f32 %v314, %v315
        %v317 = vsel %vm313, %v239, 0.0
        %v318 = vadd.f32 %v316, %v317
        %v319 = vsel %vm313, %v240, 0.0
        %v320 = vadd.f32 %v318, %v319
        %v321 = vsel %vm313, %v241, 0.0
        %v322 = vadd.f32 %v320, %v321
        %v323 = vsel %vm313, %v242, 0.0
        %v324 = vadd.f32 %v322, %v323
        %v325 = vsel %vm313, %v243, 0.0
        %v326 = vadd.f32 %v324, %v325
        %v327 = vsel %vm313, %v244, 0.0
        %v328 = vadd.f32 %v326, %v327
        %v329 = vsel %vm313, %v249, 0.0
        %v330 = vadd.f32 %v328, %v329
        %v331 = vsel %vm313, %v250, 0.0
        %v332 = vadd.f32 %v330, %v331
        %v333 = vsel %vm313, %v251, 0.0
        %v334 = vadd.f32 %v332, %v333
        %v335 = vsel %vm313, %v252, 0.0
        %v336 = vadd.f32 %v334, %v335
        %v337 = vsel %vm313, %v253, 0.0
        %v338 = vadd.f32 %v336, %v337
        %v339 = vsel %vm313, %v254, 0.0
        %v340 = vadd.f32 %v338, %v339
        %v341 = vsel %vm313, %v255, 0.0
        %v342 = vadd.f32 %v340, %v341
        %v343 = vsel %vm313, %v256, 0.0
        %v344 = vadd.f32 %v342, %v343
        %v345 = vsel %vm313, %v261, 0.0
        %v346 = vadd.f32 %v344, %v345
        %v347 = vsel %vm313, %v262, 0.0
        %v348 = vadd.f32 %v346, %v347
        %v349 = vsel %vm313, %v263, 0.0
        %v350 = vadd.f32 %v348, %v349
        %v351 = vsel %vm313, %v264, 0.0
        %v352 = vadd.f32 %v350, %v351
        %v353 = vsel %vm313, %v265, 0.0
        %v354 = vadd.f32 %v352, %v353
        %v355 = vsel %vm313, %v266, 0.0
        %v356 = vadd.f32 %v354, %v355
        %v357 = vsel %vm313, %v267, 0.0
        %v358 = vadd.f32 %v356, %v357
        %v359 = vsel %vm313, %v268, 0.0
        %v360 = vadd.f32 %v358, %v359
        %v361 = vsel %vm313, %v273, 0.0
        %v362 = vadd.f32 %v360, %v361
        %v363 = vsel %vm313, %v274, 0.0
        %v364 = vadd.f32 %v362, %v363
        %v365 = vsel %vm313, %v275, 0.0
        %v366 = vadd.f32 %v364, %v365
        %v367 = vsel %vm313, %v276, 0.0
        %v368 = vadd.f32 %v366, %v367
        %v369 = vsel %vm313, %v277, 0.0
        %v370 = vadd.f32 %v368, %v369
        %v371 = vsel %vm313, %v278, 0.0
        %v372 = vadd.f32 %v370, %v371
        %v373 = vsel %vm313, %v279, 0.0
        %v374 = vadd.f32 %v372, %v373
        %v375 = vsel %vm313, %v280, 0.0
        %v376 = vadd.f32 %v374, %v375
        %377 = vadd.xlane.f32.xlu0 %v376
        %v378 = vpop.xlane.xlu0 %377
        %v379 = vadd.f32 %v213, %v378
        %vm380 = vcmask 3072
        %381 = vst.msk [vmem:[%s185] sm:$0xf] %vm380, %v379
        %v382 = vld [vmem:[%s189] sm:$0xf]
        %v383 = vmul.f32 %v197, %v197
        %v384 = vmul.f32 %v198, %v198
        %v385 = vmul.f32 %v199, %v199
        %v386 = vmul.f32 %v200, %v200
        %v387 = vmul.f32 %v201, %v201
        %v388 = vmul.f32 %v202, %v202
        %v389 = vmul.f32 %v203, %v203
        %v390 = vmul.f32 %v204, %v204
        %v391 = vmul.f32 %v205, %v205
        %v392 = vmul.f32 %v206, %v206
        %v393 = vmul.f32 %v207, %v207
        %v394 = vmul.f32 %v208, %v208
        %v395 = vmul.f32 %v209, %v209
        %v396 = vmul.f32 %v210, %v210
        %v397 = vmul.f32 %v211, %v211
        %v398 = vmul.f32 %v212, %v212
        %415 = vst [vmem:[#allocation1] ss:$2 sm:$0xff] %v383
        %s416 = scalar_lea.vmem [#allocation1], 16
        %417 = vst [vmem:[%s416] ss:$2 sm:$0xff] %v384
        %s418 = scalar_lea.vmem [#allocation1], 32
        %419 = vst [vmem:[%s418] ss:$2 sm:$0xff] %v385
        %s420 = scalar_lea.vmem [#allocation1], 48
        %421 = vst [vmem:[%s420] ss:$2 sm:$0xff] %v386
        %v422 = vld.sshfl [vmem:[#allocation1] sm:$0xff pattern:$0x75316420]
        %v423 = vld.sshfl [vmem:[#allocation1 + $0x8] sm:$0xff pattern:$0x75316420]
        %v424 = vld.sshfl [vmem:[#allocation1 + $0x10] sm:$0xff pattern:$0x75316420]
        %v425 = vld.sshfl [vmem:[#allocation1 + $0x18] sm:$0xff pattern:$0x75316420]
        %v426 = vld.sshfl [vmem:[#allocation1 + $0x20] sm:$0xff pattern:$0x75316420]
        %v427 = vld.sshfl [vmem:[#allocation1 + $0x28] sm:$0xff pattern:$0x75316420]
        %v428 = vld.sshfl [vmem:[#allocation1 + $0x30] sm:$0xff pattern:$0x75316420]
        %v429 = vld.sshfl [vmem:[#allocation1 + $0x38] sm:$0xff pattern:$0x75316420]
        %430 = vst [vmem:[#allocation1] ss:$2 sm:$0xff] %v387
        %431 = vst [vmem:[%s416] ss:$2 sm:$0xff] %v388
        %432 = vst [vmem:[%s418] ss:$2 sm:$0xff] %v389
        %433 = vst [vmem:[%s420] ss:$2 sm:$0xff] %v390
        %v434 = vld.sshfl [vmem:[#allocation1] sm:$0xff pattern:$0x75316420]
        %v435 = vld.sshfl [vmem:[#allocation1 + $0x8] sm:$0xff pattern:$0x75316420]
        %v436 = vld.sshfl [vmem:[#allocation1 + $0x10] sm:$0xff pattern:$0x75316420]
        %v437 = vld.sshfl [vmem:[#allocation1 + $0x18] sm:$0xff pattern:$0x75316420]
        %v438 = vld.sshfl [vmem:[#allocation1 + $0x20] sm:$0xff pattern:$0x75316420]
        %v439 = vld.sshfl [vmem:[#allocation1 + $0x28] sm:$0xff pattern:$0x75316420]
        %v440 = vld.sshfl [vmem:[#allocation1 + $0x30] sm:$0xff pattern:$0x75316420]
        %v441 = vld.sshfl [vmem:[#allocation1 + $0x38] sm:$0xff pattern:$0x75316420]
        %442 = vst [vmem:[#allocation1] ss:$2 sm:$0xff] %v391
        %443 = vst [vmem:[%s416] ss:$2 sm:$0xff] %v392
        %444 = vst [vmem:[%s418] ss:$2 sm:$0xff] %v393
        %445 = vst [vmem:[%s420] ss:$2 sm:$0xff] %v394
        %v446 = vld.sshfl [vmem:[#allocation1] sm:$0xff pattern:$0x75316420]
        %v447 = vld.sshfl [vmem:[#allocation1 + $0x8] sm:$0xff pattern:$0x75316420]
        %v448 = vld.sshfl [vmem:[#allocation1 + $0x10] sm:$0xff pattern:$0x75316420]
        %v449 = vld.sshfl [vmem:[#allocation1 + $0x18] sm:$0xff pattern:$0x75316420]
        %v450 = vld.sshfl [vmem:[#allocation1 + $0x20] sm:$0xff pattern:$0x75316420]
        %v451 = vld.sshfl [vmem:[#allocation1 + $0x28] sm:$0xff pattern:$0x75316420]
        %v452 = vld.sshfl [vmem:[#allocation1 + $0x30] sm:$0xff pattern:$0x75316420]
        %v453 = vld.sshfl [vmem:[#allocation1 + $0x38] sm:$0xff pattern:$0x75316420]
        %454 = vst [vmem:[#allocation1] ss:$2 sm:$0xff] %v395
        %455 = vst [vmem:[%s416] ss:$2 sm:$0xff] %v396
        %456 = vst [vmem:[%s418] ss:$2 sm:$0xff] %v397
        %457 = vst [vmem:[%s420] ss:$2 sm:$0xff] %v398
        %v458 = vld.sshfl [vmem:[#allocation1] sm:$0xff pattern:$0x75316420]
        %v459 = vld.sshfl [vmem:[#allocation1 + $0x8] sm:$0xff pattern:$0x75316420]
        %v460 = vld.sshfl [vmem:[#allocation1 + $0x10] sm:$0xff pattern:$0x75316420]
        %v461 = vld.sshfl [vmem:[#allocation1 + $0x18] sm:$0xff pattern:$0x75316420]
        %v462 = vld.sshfl [vmem:[#allocation1 + $0x20] sm:$0xff pattern:$0x75316420]
        %v463 = vld.sshfl [vmem:[#allocation1 + $0x28] sm:$0xff pattern:$0x75316420]
        %v464 = vld.sshfl [vmem:[#allocation1 + $0x30] sm:$0xff pattern:$0x75316420]
        %v465 = vld.sshfl [vmem:[#allocation1 + $0x38] sm:$0xff pattern:$0x75316420]
        %v498 = vsel %vm313, %v422, 0.0
        %v499 = vsel %vm313, %v423, 0.0
        %v500 = vadd.f32 %v498, %v499
        %v501 = vsel %vm313, %v424, 0.0
        %v502 = vadd.f32 %v500, %v501
        %v503 = vsel %vm313, %v425, 0.0
        %v504 = vadd.f32 %v502, %v503
        %v505 = vsel %vm313, %v426, 0.0
        %v506 = vadd.f32 %v504, %v505
        %v507 = vsel %vm313, %v427, 0.0
        %v508 = vadd.f32 %v506, %v507
        %v509 = vsel %vm313, %v428, 0.0
        %v510 = vadd.f32 %v508, %v509
        %v511 = vsel %vm313, %v429, 0.0
        %v512 = vadd.f32 %v510, %v511
        %v513 = vsel %vm313, %v434, 0.0
        %v514 = vadd.f32 %v512, %v513
        %v515 = vsel %vm313, %v435, 0.0
        %v516 = vadd.f32 %v514, %v515
        %v517 = vsel %vm313, %v436, 0.0
        %v518 = vadd.f32 %v516, %v517
        %v519 = vsel %vm313, %v437, 0.0
        %v520 = vadd.f32 %v518, %v519
        %v521 = vsel %vm313, %v438, 0.0
        %v522 = vadd.f32 %v520, %v521
        %v523 = vsel %vm313, %v439, 0.0
        %v524 = vadd.f32 %v522, %v523
        %v525 = vsel %vm313, %v440, 0.0
        %v526 = vadd.f32 %v524, %v525
        %v527 = vsel %vm313, %v441, 0.0
        %v528 = vadd.f32 %v526, %v527
        %v529 = vsel %vm313, %v446, 0.0
        %v530 = vadd.f32 %v528, %v529
        %v531 = vsel %vm313, %v447, 0.0
        %v532 = vadd.f32 %v530, %v531
        %v533 = vsel %vm313, %v448, 0.0
        %v534 = vadd.f32 %v532, %v533
        %v535 = vsel %vm313, %v449, 0.0
        %v536 = vadd.f32 %v534, %v535
        %v537 = vsel %vm313, %v450, 0.0
        %v538 = vadd.f32 %v536, %v537
        %v539 = vsel %vm313, %v451, 0.0
        %v540 = vadd.f32 %v538, %v539
        %v541 = vsel %vm313, %v452, 0.0
        %v542 = vadd.f32 %v540, %v541
        %v543 = vsel %vm313, %v453, 0.0
        %v544 = vadd.f32 %v542, %v543
        %v545 = vsel %vm313, %v458, 0.0
        %v546 = vadd.f32 %v544, %v545
        %v547 = vsel %vm313, %v459, 0.0
        %v548 = vadd.f32 %v546, %v547
        %v549 = vsel %vm313, %v460, 0.0
        %v550 = vadd.f32 %v548, %v549
        %v551 = vsel %vm313, %v461, 0.0
        %v552 = vadd.f32 %v550, %v551
        %v553 = vsel %vm313, %v462, 0.0
        %v554 = vadd.f32 %v552, %v553
        %v555 = vsel %vm313, %v463, 0.0
        %v556 = vadd.f32 %v554, %v555
        %v557 = vsel %vm313, %v464, 0.0
        %v558 = vadd.f32 %v556, %v557
        %v559 = vsel %vm313, %v465, 0.0
        %v560 = vadd.f32 %v558, %v559
        %561 = vadd.xlane.f32.xlu0 %v560
        %v562 = vpop.xlane.xlu0 %561
        %v563 = vadd.f32 %v382, %v562
        %564 = vst.msk [vmem:[%s189] sm:$0xf] %vm380, %v563
        %p565 = scmp.lt.s32.totalorder %s21, 1
        %s566 = scalar_select %p565, %s21, 1
        %s567 = smul.addr %s566, 4
        %s568 = scalar_lea.vmem %s1, %s567
        %p569 = scmp.lt.s32.totalorder %s21, 1
        %s570 = scalar_select %p569, %s21, 1
        %s571 = smul.addr %s570, 4
        %s572 = scalar_lea.vmem %s2, %s571
        // Predicated region
        $region33: #{tpu_custom_call.1} parent=23 // pred_check
          %p573 = pneg %p75
        $region34: #{tpu_custom_call.1} parent=23 // pred_check_branch
          %575 = sbr.rel (%p573) target = $region36
        $region35: #{tpu_custom_call.1} parent=23 // pred_region
          _
        $region36: #{tpu_custom_call.1} parent=23 // pred_fallthru
          _
        // Predicated region
        $region37: #{tpu_custom_call.1} parent=23 // pred_check
          %p576 = pneg %p101
        $region38: #{tpu_custom_call.1} parent=23 // pred_check_branch
          %578 = sbr.rel (%p576) target = $region40
        $region39: #{tpu_custom_call.1} parent=23 // pred_region
          _
        $region40: #{tpu_custom_call.1} parent=23 // pred_fallthru
          _
      $region24: #{tpu_custom_call.1} parent=5 // pred_fallthru
        _
      %p579 = scmp.le.s32.totalorder 2, %s12
      // Predicated region
      $region41: #{tpu_custom_call.1} parent=5 // pred_check
        %p580 = pneg %p579
      $region42: #{tpu_custom_call.1} parent=5 // pred_check_branch
        %582 = sbr.rel (%p580) target = $region44
      $region43: #{tpu_custom_call.1} parent=5 // pred_region
        %s583 = ssub.s32 %s12, 2
        // Predicated region
        $region45: #{tpu_custom_call.1} parent=43 // pred_check
          %p584 = pneg %p81
        $region46: #{tpu_custom_call.1} parent=43 // pred_check_branch
          %586 = sbr.rel (%p584) target = $region48
        $region47: #{tpu_custom_call.1} parent=43 // pred_region
          %p587 = scmp.lt.s32.totalorder %s23, 1
          %s588 = scalar_select %p587, %s23, 1
          %s589 = smul.addr %s588, 4
          %s590 = scalar_lea.vmem %s1, %s589
        $region48: #{tpu_custom_call.1} parent=43 // pred_fallthru
          _
        // Predicated region
        $region49: #{tpu_custom_call.1} parent=43 // pred_check
          %p591 = pneg %p107
        $region50: #{tpu_custom_call.1} parent=43 // pred_check_branch
          %593 = sbr.rel (%p591) target = $region52
        $region51: #{tpu_custom_call.1} parent=43 // pred_region
          %p594 = scmp.lt.s32.totalorder %s23, 1
          %s595 = scalar_select %p594, %s23, 1
          %s596 = smul.addr %s595, 4
          %s597 = scalar_lea.vmem %s2, %s596
        $region52: #{tpu_custom_call.1} parent=43 // pred_fallthru
          _
      $region44: #{tpu_custom_call.1} parent=5 // pred_fallthru
        _
    $region6: #{tpu_custom_call.1} parent=1 // loop_footer
      %s16 = sadd.s32 1, %s12
    $region7: #{tpu_custom_call.1} parent=1 // loop_footer_branch
      %11 = sbr.rel target = $region3
    $region8: #{tpu_custom_call.1} parent=1 // loop_exit
      _
    %598 = vsyncpa [#allocation3], 1
    %s599 = scalar_lea.sflag [#allocation3], 1
    %600 = vsyncpa %s599, 1

</llo_original>
